<compile_context>
chip_gen: v6e
topology: v6e:2x2x1
jax: 0.10.0
libtpu: 0.0.40
codegen_flags: <defaults>
</compile_context>

<pallas_src>
import functools

import jax
import jax.numpy as jnp
from jax.experimental import pallas as pl
from jax.experimental.pallas import tpu as pltpu

D_MODEL = 32
EPSILON = 1e-4


def _layernorm_kernel(x_ref, w_ref, b_ref, seg_ref, o_ref, *, d, epsilon):
    # x_ref : (tile, lanes)  -- `lanes // d` logical rows packed per 128-lane row
    # w_ref, b_ref : (1, lanes)   -- params tiled across the packed segments
    # seg_ref : (lanes, lanes)    -- block-diagonal segment-sum matrix (f32)
    x = x_ref[...].astype(jnp.float32)
    seg = seg_ref[...]
    w = w_ref[...].astype(jnp.float32)
    b = b_ref[...].astype(jnp.float32)

    # First and second raw moments via two *independent* MXU segmented
    # reductions; the block-diagonal seg matrix also broadcasts each segment's
    # sum back across that segment's lanes, so no cross-lane XLU work is
    # needed.  Neither dot depends on the other, so the scheduler can keep the
    # MXU fed and hide both under the block's HBM DMA.
    seg_sum = jnp.dot(x, seg, preferred_element_type=jnp.float32)
    seg_sqsum = jnp.dot(x * x, seg, preferred_element_type=jnp.float32)

    mean = seg_sum * jnp.float32(1.0 / d)
    # Unbiased variance (Bessel's correction), matching torch.std:
    #   sum((x - mean)^2) == sum(x^2) - sum(x) * mean
    # (slightly less cancellation-proof than the two-pass xc*xc form for
    #  |mean| >> std; clamp at 0 guards the sqrt)
    var = jnp.maximum(seg_sqsum - seg_sum * mean, jnp.float32(0.0))
    std = jnp.sqrt(var * jnp.float32(1.0 / (d - 1)))

    # Exact reciprocal (approx=True is ~2^-12 rel. error -> too loose for 1e-5),
    # keeping the torch `x / (std + eps)` denominator semantics.
    inv = pl.reciprocal(std + jnp.float32(epsilon), approx=False)

    y = (x - mean) * inv * w + b
    o_ref[...] = y.astype(o_ref.dtype)


def _choose_tile(pr, max_tile):
    """Packed-row tile: ~1 MiB blocks to amortise the ~0.35 us per-grid-step
    overhead, >= 2 grid steps when possible (v7x megacore), and a multiple of
    8 sublanes unless the block covers the whole row axis."""
    if pr <= 8:
        return pr                        # single full-dim block (always legal)
    if pr <= 2 * max_tile:
        half = -(-pr // 2)               # ceil(pr / 2) -> ~2 grid steps
        return min(-(-half // 8) * 8, max_tile)
    return max_tile


def layer_norm(x, w_ln, b_ln, use_ln=True, epsilon=EPSILON, tile_packed_rows=2048):
    """x: (..., d_model); w_ln/b_ln: (d_model,). Matches the PyTorch LayerNorm."""
    if not use_ln:
        # matches the `else: return x` branch of the PyTorch module
        return x

    orig_shape = x.shape
    d = orig_shape[-1]
    rows = 1
    for s in orig_shape[:-1]:
        rows *= s
    x2d = x.reshape(rows, d)

    # Lane-dense layout: fold `pack` consecutive logical rows into one
    # 128-lane row via a free row-major reshape (d=32 -> pack=4).
    pack = 128 // d if (d <= 128 and 128 % d == 0) else 1
    lanes = d * pack

    padded_rows = -(-rows // pack) * pack
    if padded_rows != rows:
        # Only triggers when rows % pack != 0 (adds < pack rows).  Padded rows
        # come out as y == b_ln (std == 0 -> inv = 1/eps) and are sliced off.
        # TODO(synk): handle the <pack-row tail in-kernel (scalar-prefetch row
        # count + masked store) to drop this extra pad/slice HBM pass entirely.
        x2d = jnp.pad(x2d, ((0, padded_rows - rows), (0, 0)))
    pr = padded_rows // pack
    xp = x2d.reshape(pr, lanes)          # free: row-major contiguous

    max_tile = max(8, (int(tile_packed_rows) // 8) * 8)
    tile = _choose_tile(pr, max_tile)
    grid = pl.cdiv(pr, tile)             # partial last block is masked by Pallas

    # Params tiled to the packed 128-lane layout; DMA'd once (constant
    # index_map) and VMEM-resident across the whole grid.
    wp = jnp.tile(w_ln.astype(jnp.float32), pack).reshape(1, lanes)
    bp = jnp.tile(b_ln.astype(jnp.float32), pack).reshape(1, lanes)

    # Block-diagonal segment-sum matrix: seg_mat[i, j] = 1 iff i//d == j//d.
    seg_id = jnp.arange(lanes, dtype=jnp.int32) // d
    seg_mat = (seg_id[:, None] == seg_id[None, :]).astype(jnp.float32)

    kernel = functools.partial(_layernorm_kernel, d=d, epsilon=epsilon)

    out = pl.pallas_call(
        kernel,
        out_shape=jax.ShapeDtypeStruct((pr, lanes), x.dtype),
        grid_spec=pltpu.PrefetchScalarGridSpec(
            num_scalar_prefetch=0,
            grid=(grid,),
            in_specs=[
                pl.BlockSpec((tile, lanes), lambda i: (i, 0)),
                pl.BlockSpec((1, lanes), lambda i: (0, 0)),
                pl.BlockSpec((1, lanes), lambda i: (0, 0)),
                pl.BlockSpec((lanes, lanes), lambda i: (0, 0)),
            ],
            out_specs=pl.BlockSpec((tile, lanes), lambda i: (i, 0)),
        ),
        compiler_params=pltpu.CompilerParams(
            # Rows are independent -> parallel lets v7x shard the grid across
            # its 2 TensorCores; harmless no-op on v5e/v6e.
            dimension_semantics=("parallel",),
            # ~1 MiB blocks double-buffered (in+out) plus f32 temporaries stay
            # well under 32 MiB on every generation (v5e default is 16 MiB,
            # v7x physical VMEM is 64 MiB).
            vmem_limit_bytes=32 * 1024 * 1024,
        ),
    )(xp, wp, bp, seg_mat)

    out = out.reshape(padded_rows, d)
    if padded_rows != rows:
        out = out[:rows]
    return out.reshape(orig_shape)


if __name__ == "__main__":
    key = jax.random.PRNGKey(0)

    batch, seq = 2, 8
    x = jax.random.normal(key, (batch, seq, D_MODEL), dtype=jnp.float32)

    # deterministic parameter init, matching nn.Parameter(torch.ones/zeros(d_model))
    w_ln = jnp.ones((D_MODEL,), dtype=jnp.float32)
    b_ln = jnp.zeros((D_MODEL,), dtype=jnp.float32)

    y = layer_norm(x, w_ln, b_ln, use_ln=True)
    y = jax.block_until_ready(y)

    # pure-JAX reference (same unbiased-std + (std + eps) semantics as torch)
    mean = jnp.mean(x, axis=-1, keepdims=True)
    xc = x - mean
    std = jnp.sqrt(jnp.sum(xc * xc, axis=-1, keepdims=True) / (D_MODEL - 1))
    ref = xc / (std + EPSILON) * w_ln + b_ln

    assert y.shape == x.shape
    err = jnp.max(jnp.abs(y - ref))
    assert err < 1e-5, err

    print("KERNEL_OK")
</pallas_src>

<mosaic_0001>
module attributes {stable_mosaic.version = 11 : i64} {
  func.func @_layernorm_kernel(%arg0: i32, %arg1: memref<4x128xf32, #tpu.memory_space<vmem>>, %arg2: memref<1x128xf32, #tpu.memory_space<vmem>>, %arg3: memref<1x128xf32, #tpu.memory_space<vmem>>, %arg4: memref<128x128xf32, #tpu.memory_space<vmem>>, %arg5: memref<4x128xf32, #tpu.memory_space<vmem>>) attributes {dimension_semantics = [#tpu.dimension_semantics<parallel>], iteration_bounds = array<i64: 1>, scalar_prefetch = 0 : i64, scratch_operands = 0 : i64, tpu.core_type = #tpu.core_type<tc>, window_params = [{transform_indices = @transform_0, window_bounds = array<i64: 4, 128>}, {pipeline_mode = #tpu.pipeline_mode<synchronous>, transform_indices = @transform_1, window_bounds = array<i64: 1, 128>}, {pipeline_mode = #tpu.pipeline_mode<synchronous>, transform_indices = @transform_2, window_bounds = array<i64: 1, 128>}, {pipeline_mode = #tpu.pipeline_mode<synchronous>, transform_indices = @transform_3, window_bounds = array<i64: 128, 128>}, {transform_indices = @transform_4, window_bounds = array<i64: 4, 128>}]} {
    %c0 = arith.constant 0 : index
    %c0_0 = arith.constant 0 : index
    %0 = vector.load %arg1[%c0, %c0_0] : memref<4x128xf32, #tpu.memory_space<vmem>>, vector<4x128xf32>
    %c0_1 = arith.constant 0 : index
    %c0_2 = arith.constant 0 : index
    %1 = vector.load %arg4[%c0_1, %c0_2] : memref<128x128xf32, #tpu.memory_space<vmem>>, vector<128x128xf32>
    %c0_3 = arith.constant 0 : index
    %c0_4 = arith.constant 0 : index
    %2 = vector.load %arg2[%c0_3, %c0_4] : memref<1x128xf32, #tpu.memory_space<vmem>>, vector<1x128xf32>
    %c0_5 = arith.constant 0 : index
    %c0_6 = arith.constant 0 : index
    %3 = vector.load %arg3[%c0_5, %c0_6] : memref<1x128xf32, #tpu.memory_space<vmem>>, vector<1x128xf32>
    %cst = arith.constant dense<0.000000e+00> : vector<4x128xf32>
    %4 = tpu.matmul %0, %1, %cst {dimension_numbers = #tpu.dot_dimension_numbers<[1], [0], [0], [1], [0, 0, 1, 1], [], []>} : vector<4x128xf32>, vector<128x128xf32>, vector<4x128xf32> -> vector<4x128xf32>
    %5 = arith.mulf %0, %0 : vector<4x128xf32>
    %cst_7 = arith.constant dense<0.000000e+00> : vector<4x128xf32>
    %6 = tpu.matmul %5, %1, %cst_7 {dimension_numbers = #tpu.dot_dimension_numbers<[1], [0], [0], [1], [0, 0, 1, 1], [], []>} : vector<4x128xf32>, vector<128x128xf32>, vector<4x128xf32> -> vector<4x128xf32>
    %cst_8 = arith.constant 3.125000e-02 : f32
    %7 = vector.broadcast %cst_8 : f32 to vector<4x128xf32>
    %8 = arith.mulf %4, %7 : vector<4x128xf32>
    %9 = arith.mulf %4, %8 : vector<4x128xf32>
    %10 = arith.subf %6, %9 : vector<4x128xf32>
    %cst_9 = arith.constant 0.000000e+00 : f32
    %11 = vector.broadcast %cst_9 : f32 to vector<4x128xf32>
    %12 = arith.maximumf %10, %11 : vector<4x128xf32>
    %cst_10 = arith.constant 0.0322580636 : f32
    %13 = vector.broadcast %cst_10 : f32 to vector<4x128xf32>
    %14 = arith.mulf %12, %13 : vector<4x128xf32>
    %15 = math.sqrt %14 : vector<4x128xf32>
    %cst_11 = arith.constant 9.99999974E-5 : f32
    %16 = vector.broadcast %cst_11 : f32 to vector<4x128xf32>
    %17 = arith.addf %15, %16 : vector<4x128xf32>
    %18 = tpu.reciprocal %17 : vector<4x128xf32> -> vector<4x128xf32>
    %19 = arith.subf %0, %8 : vector<4x128xf32>
    %20 = arith.mulf %19, %18 : vector<4x128xf32>
    %21 = vector.broadcast %2 : vector<1x128xf32> to vector<4x128xf32>
    %22 = arith.mulf %20, %21 : vector<4x128xf32>
    %23 = vector.broadcast %3 : vector<1x128xf32> to vector<4x128xf32>
    %24 = arith.addf %22, %23 : vector<4x128xf32>
    %c0_12 = arith.constant 0 : index
    %c0_13 = arith.constant 0 : index
    %25 = vector.load %arg5[%c0_12, %c0_13] : memref<4x128xf32, #tpu.memory_space<vmem>>, vector<4x128xf32>
    tpu.vector_store %arg5[%c0_12, %c0_13], %24 {strides = array<i32>} : memref<4x128xf32, #tpu.memory_space<vmem>>, vector<4x128xf32>,
    return
  }
  func.func @transform_0(%arg0: i32) -> (i32, i32) {
    %c0_i32 = arith.constant 0 : i32
    %c0_i32_0 = arith.constant 0 : i32
    return %arg0, %c0_i32 : i32, i32
  }
  func.func @transform_1(%arg0: i32) -> (i32, i32) {
    %c0_i32 = arith.constant 0 : i32
    %c0_i32_0 = arith.constant 0 : i32
    %c0_i32_1 = arith.constant 0 : i32
    return %c0_i32, %c0_i32_0 : i32, i32
  }
  func.func @transform_2(%arg0: i32) -> (i32, i32) {
    %c0_i32 = arith.constant 0 : i32
    %c0_i32_0 = arith.constant 0 : i32
    %c0_i32_1 = arith.constant 0 : i32
    return %c0_i32, %c0_i32_0 : i32, i32
  }
  func.func @transform_3(%arg0: i32) -> (i32, i32) {
    %c0_i32 = arith.constant 0 : i32
    %c0_i32_0 = arith.constant 0 : i32
    %c0_i32_1 = arith.constant 0 : i32
    return %c0_i32, %c0_i32_0 : i32, i32
  }
  func.func @transform_4(%arg0: i32) -> (i32, i32) {
    %c0_i32 = arith.constant 0 : i32
    %c0_i32_0 = arith.constant 0 : i32
    return %arg0, %c0_i32 : i32, i32
  }
}

</mosaic_0001>

<llo_original>
// kernel: tpu_custom_call.1
$region0: #{tpu_custom_call.1}
  #allocation0 [shape = 'u32[]', space=smem, size = 0x4, offset = 0x4, fixed_abs, tag = 'smem constant byte address 0x4 - core index']
  #allocation1 [shape = 'u32[144,128]{1,0:T(1,128)}', space=vmem, size = 0x12000, scoped, tag = 'internal scratch']
  %s0 = inlined_call_operand.hbm [shape: f32[4,128], index: 0, kind: input, shape index: {}]
  %s1 = inlined_call_operand.vmem [shape: f32[1,128], index: 1, kind: input, shape index: {}]
  %s2 = inlined_call_operand.vmem [shape: f32[1,128], index: 2, kind: input, shape index: {}]
  %s3 = inlined_call_operand.hbm [shape: f32[128,128], index: 3, kind: input, shape index: {}]
  %s4 = inlined_call_operand.hbm [shape: f32[4,128], index: 4, kind: output, shape index: {}]
  %s5 = sld [smem:[#allocation0]]
  $region34: #{tpu_custom_call.1} parent=0
    _
  %s7 = ssub.s32 1, %s5
  %s8 = scalar_select 0, %s7, %s5
  $region1: #{tpu_custom_call.1} parent=0
    #allocation2 [shape = 'u8[2048]{0}', space=vmem, size = 0x800, scoped, tag = 'input window, operand 0, single buffered']
    #allocation3 [shape = 's32[1]{0}', space=sflag, size = 0x4, scoped, tag = 'scoped memory for tpu_custom_call.1']
    #allocation4 [shape = 's32[1]{0}', space=sflag, size = 0x4, scoped, tag = 'scoped memory for tpu_custom_call.1']
    #allocation5 [shape = 'u8[65536]{0}', space=vmem, size = 0x10000, scoped, tag = 'input window, operand 3, single buffered']
    #allocation6 [shape = 's32[1]{0}', space=sflag, size = 0x4, scoped, tag = 'scoped memory for tpu_custom_call.1']
    #allocation7 [shape = 'u8[2048]{0}', space=vmem, size = 0x800, scoped, tag = 'output window, operand 0, single buffered']
    %9 = vsyncpa [#allocation3], 0
    %10 = vsyncpa [#allocation6], 0
    %11 = vsyncpa [#allocation4], 0
    // Predicated region
    $region2: #{tpu_custom_call.1} parent=1 // pred_check
      _
    $region3: #{tpu_custom_call.1} parent=1 // pred_check_branch
      %13 = sbr.rel (0) target = $region5
    $region4: #{tpu_custom_call.1} parent=1 // pred_region
      %s15 = ssub.s32 64, 64
      %16 = vsyncadd [#allocation3], %s15
      %s18 = sshll.u32 [#allocation2], 4
      %s19 = int_to_ptr.vmem [resolvable:$true] %s18
      %21 = dma.hbm_to_vmem [thread:$0]  %s0, 64, %s19, [#allocation3]
    $region5: #{tpu_custom_call.1} parent=1 // pred_fallthru
      _
    // Predicated region
    $region6: #{tpu_custom_call.1} parent=1 // pred_check
      _
    $region7: #{tpu_custom_call.1} parent=1 // pred_check_branch
      %23 = sbr.rel (0) target = $region9
    $region8: #{tpu_custom_call.1} parent=1 // pred_region
      _
    $region9: #{tpu_custom_call.1} parent=1 // pred_fallthru
      _
    // Predicated region
    $region10: #{tpu_custom_call.1} parent=1 // pred_check
      _
    $region11: #{tpu_custom_call.1} parent=1 // pred_check_branch
      %25 = sbr.rel (0) target = $region13
    $region12: #{tpu_custom_call.1} parent=1 // pred_region
      _
    $region13: #{tpu_custom_call.1} parent=1 // pred_fallthru
      _
    // Predicated region
    $region14: #{tpu_custom_call.1} parent=1 // pred_check
      _
    $region15: #{tpu_custom_call.1} parent=1 // pred_check_branch
      %27 = sbr.rel (0) target = $region17
    $region16: #{tpu_custom_call.1} parent=1 // pred_region
      %s29 = ssub.s32 2048, 2048
      %30 = vsyncadd [#allocation6], %s29
      %s31 = sshll.u32 [#allocation5], 4
      %s32 = int_to_ptr.vmem [resolvable:$true] %s31
      %37 = dma.hbm_to_vmem [thread:$0]  %s3, 2048, %s32, [#allocation6], 128, 128, 8
    $region17: #{tpu_custom_call.1} parent=1 // pred_fallthru
      _
    // Predicated region
    $region18: #{tpu_custom_call.1} parent=1 // pred_check
      _
    $region19: #{tpu_custom_call.1} parent=1 // pred_check_branch
      %39 = sbr.rel (0) target = $region21
    $region20: #{tpu_custom_call.1} parent=1 // pred_region
      %40 = dma.done [#allocation3], 64
    $region21: #{tpu_custom_call.1} parent=1 // pred_fallthru
      _
    // Predicated region
    $region22: #{tpu_custom_call.1} parent=1 // pred_check
      _
    $region23: #{tpu_custom_call.1} parent=1 // pred_check_branch
      %42 = sbr.rel (0) target = $region25
    $region24: #{tpu_custom_call.1} parent=1 // pred_region
      %43 = dma.done [#allocation6], 2048
    $region25: #{tpu_custom_call.1} parent=1 // pred_fallthru
      _
    %v44 = vld [vmem:[#allocation2] sm:$0xf]
    %v45 = vld [vmem:[#allocation5] sm:$0xff]
    %v46 = vld [vmem:[#allocation5 + $0x8] sm:$0xff]
    %v47 = vld [vmem:[#allocation5 + $0x10] sm:$0xff]
    %v48 = vld [vmem:[#allocation5 + $0x18] sm:$0xff]
    %v49 = vld [vmem:[#allocation5 + $0x20] sm:$0xff]
    %v50 = vld [vmem:[#allocation5 + $0x28] sm:$0xff]
    %v51 = vld [vmem:[#allocation5 + $0x30] sm:$0xff]
    %v52 = vld [vmem:[#allocation5 + $0x38] sm:$0xff]
    %v53 = vld [vmem:[#allocation5 + $0x40] sm:$0xff]
    %v54 = vld [vmem:[#allocation5 + $0x48] sm:$0xff]
    %v55 = vld [vmem:[#allocation5 + $0x50] sm:$0xff]
    %v56 = vld [vmem:[#allocation5 + $0x58] sm:$0xff]
    %v57 = vld [vmem:[#allocation5 + $0x60] sm:$0xff]
    %v58 = vld [vmem:[#allocation5 + $0x68] sm:$0xff]
    %v59 = vld [vmem:[#allocation5 + $0x70] sm:$0xff]
    %v60 = vld [vmem:[#allocation5 + $0x78] sm:$0xff]
    %v61 = vld [vmem:[%s1] sm:$0x1]
    %v62 = vld [vmem:[%s2] sm:$0x1]
    %63 = vmatprep.subr.mxu0 0.0
    %64 = vmatpush1.msra.mxu0 %v60
    %65 = vmatprep.subr.mxu0 0.0
    %66 = vmatpush1.msra.mxu0 %v59
    %67 = vmatprep.subr.mxu0 0.0
    %68 = vmatpush1.msra.mxu0 %v58
    %69 = vmatprep.subr.mxu0 0.0
    %70 = vmatpush1.msra.mxu0 %v57
    %71 = vmatprep.subr.mxu0 0.0
    %72 = vmatpush1.msra.mxu0 %v56
    %73 = vmatprep.subr.mxu0 0.0
    %74 = vmatpush1.msra.mxu0 %v55
    %75 = vmatprep.subr.mxu0 0.0
    %76 = vmatpush1.msra.mxu0 %v54
    %77 = vmatprep.subr.mxu0 0.0
    %78 = vmatpush1.msra.mxu0 %v53
    %79 = vmatprep.subr.mxu0 0.0
    %80 = vmatpush1.msra.mxu0 %v52
    %81 = vmatprep.subr.mxu0 0.0
    %82 = vmatpush1.msra.mxu0 %v51
    %83 = vmatprep.subr.mxu0 0.0
    %84 = vmatpush1.msra.mxu0 %v50
    %85 = vmatprep.subr.mxu0 0.0
    %86 = vmatpush1.msra.mxu0 %v49
    %87 = vmatprep.subr.mxu0 0.0
    %88 = vmatpush1.msra.mxu0 %v48
    %89 = vmatprep.subr.mxu0 0.0
    %90 = vmatpush1.msra.mxu0 %v47
    %91 = vmatprep.subr.mxu0 0.0
    %92 = vmatpush1.msra.mxu0 %v46
    %93 = vmatprep.subr.mxu0 0.0
    %94 = vmatpush1.msra.mxu0 %v45
    %95 = vmatprep.subr.mxu0 0.0
    %96 = vmatpush2.msra.mxu0 0.0
    %97 = vmatprep.subr.mxu0 0.0
    %98 = vmatpush2.msra.mxu0 0.0
    %99 = vmatprep.subr.mxu0 0.0
    %100 = vmatpush2.msra.mxu0 0.0
    %101 = vmatprep.subr.mxu0 0.0
    %102 = vmatpush2.msra.mxu0 0.0
    %103 = vmatprep.subr.mxu0 0.0
    %104 = vmatpush2.msra.mxu0 0.0
    %105 = vmatprep.subr.mxu0 0.0
    %106 = vmatpush2.msra.mxu0 0.0
    %107 = vmatprep.subr.mxu0 0.0
    %108 = vmatpush2.msra.mxu0 0.0
    %109 = vmatprep.subr.mxu0 0.0
    %110 = vmatpush2.msra.mxu0 0.0
    %111 = vmatprep.subr.mxu0 0.0
    %112 = vmatpush2.msra.mxu0 0.0
    %113 = vmatprep.subr.mxu0 0.0
    %114 = vmatpush2.msra.mxu0 0.0
    %115 = vmatprep.subr.mxu0 0.0
    %116 = vmatpush2.msra.mxu0 0.0
    %117 = vmatprep.subr.mxu0 0.0
    %118 = vmatpush2.msra.mxu0 0.0
    %119 = vmatprep.subr.mxu0 0.0
    %120 = vmatpush2.msra.mxu0 0.0
    %121 = vmatprep.subr.mxu0 0.0
    %122 = vmatpush2.msra.mxu0 0.0
    %123 = vmatprep.subr.mxu0 0.0
    %124 = vmatpush2.msra.mxu0 0.0
    %125 = vmatprep.subr.mxu0 0.0
    %126 = vmatpush2.msra.mxu0 0.0
    %127 = vmatprep.mubr.f32.mxu0 0.0
    %128 = vmatmul.mubr.f32.gmra.mxu0 %v44
    %v129 = vpop.f32.mrf.mxu0
    %v130 = vadd.f32 0.0, %v129
    %v131 = vpop.f32.mrf.mxu0
    %132 = vdwg.mxu0
    %v133 = vmul.f32 %v44, %v44
    %134 = vmatprep.subr.mxu0 0.0
    %135 = vmatpush1.msra.mxu0 %v60
    %136 = vmatprep.subr.mxu0 0.0
    %137 = vmatpush1.msra.mxu0 %v59
    %138 = vmatprep.subr.mxu0 0.0
    %139 = vmatpush1.msra.mxu0 %v58
    %140 = vmatprep.subr.mxu0 0.0
    %141 = vmatpush1.msra.mxu0 %v57
    %142 = vmatprep.subr.mxu0 0.0
    %143 = vmatpush1.msra.mxu0 %v56
    %144 = vmatprep.subr.mxu0 0.0
    %145 = vmatpush1.msra.mxu0 %v55
    %146 = vmatprep.subr.mxu0 0.0
    %147 = vmatpush1.msra.mxu0 %v54
    %148 = vmatprep.subr.mxu0 0.0
    %149 = vmatpush1.msra.mxu0 %v53
    %150 = vmatprep.subr.mxu0 0.0
    %151 = vmatpush1.msra.mxu0 %v52
    %152 = vmatprep.subr.mxu0 0.0
    %153 = vmatpush1.msra.mxu0 %v51
    %154 = vmatprep.subr.mxu0 0.0
    %155 = vmatpush1.msra.mxu0 %v50
    %156 = vmatprep.subr.mxu0 0.0
    %157 = vmatpush1.msra.mxu0 %v49
    %158 = vmatprep.subr.mxu0 0.0
    %159 = vmatpush1.msra.mxu0 %v48
    %160 = vmatprep.subr.mxu0 0.0
    %161 = vmatpush1.msra.mxu0 %v47
    %162 = vmatprep.subr.mxu0 0.0
    %163 = vmatpush1.msra.mxu0 %v46
    %164 = vmatprep.subr.mxu0 0.0
    %165 = vmatpush1.msra.mxu0 %v45
    %166 = vmatprep.subr.mxu0 0.0
    %167 = vmatpush2.msra.mxu0 0.0
    %168 = vmatprep.subr.mxu0 0.0
    %169 = vmatpush2.msra.mxu0 0.0
    %170 = vmatprep.subr.mxu0 0.0
    %171 = vmatpush2.msra.mxu0 0.0
    %172 = vmatprep.subr.mxu0 0.0
    %173 = vmatpush2.msra.mxu0 0.0
    %174 = vmatprep.subr.mxu0 0.0
    %175 = vmatpush2.msra.mxu0 0.0
    %176 = vmatprep.subr.mxu0 0.0
    %177 = vmatpush2.msra.mxu0 0.0
    %178 = vmatprep.subr.mxu0 0.0
    %179 = vmatpush2.msra.mxu0 0.0
    %180 = vmatprep.subr.mxu0 0.0
    %181 = vmatpush2.msra.mxu0 0.0
    %182 = vmatprep.subr.mxu0 0.0
    %183 = vmatpush2.msra.mxu0 0.0
    %184 = vmatprep.subr.mxu0 0.0
    %185 = vmatpush2.msra.mxu0 0.0
    %186 = vmatprep.subr.mxu0 0.0
    %187 = vmatpush2.msra.mxu0 0.0
    %188 = vmatprep.subr.mxu0 0.0
    %189 = vmatpush2.msra.mxu0 0.0
    %190 = vmatprep.subr.mxu0 0.0
    %191 = vmatpush2.msra.mxu0 0.0
    %192 = vmatprep.subr.mxu0 0.0
    %193 = vmatpush2.msra.mxu0 0.0
    %194 = vmatprep.subr.mxu0 0.0
    %195 = vmatpush2.msra.mxu0 0.0
    %196 = vmatprep.subr.mxu0 0.0
    %197 = vmatpush2.msra.mxu0 0.0
    %198 = vmatprep.mubr.f32.mxu0 0.0
    %199 = vmatmul.mubr.f32.gmra.mxu0 %v133
    %v200 = vpop.f32.mrf.mxu0
    %v201 = vadd.f32 0.0, %v200
    %v202 = vpop.f32.mrf.mxu0
    %203 = vdwg.mxu0
    %v204 = vmul.f32 %v130, 0.03125
    %v205 = vmul.f32 %v130, %v204
    %v206 = vsub.f32 %v201, %v205
    %v207 = vmax.f32 %v206, 0.0
    %v208 = vmul.f32 %v207, 0.032258064
    %v209 = vrsqrt.pop %v208
    %v210 = vmul.f32 %v208, %v209
    %vm211 = vcmp.eq.f32.partialorder %v208, inf
    %v212 = vsel %vm211, %v208, %v210
    %vm213 = vcmp.eq.f32.partialorder %v208, 0.0
    %v214 = vand.u32 %v208, 2147483648
    %v215 = vsel %vm213, %v214, %v212
    %v216 = vadd.f32 %v215, 0.0001
    %v217 = vrcp.pop %v216
    %v218 = vsub.f32 %v44, %v204
    %v219 = vmul.f32 %v218, %v217
    %v221 = vlaneseq
    %v222 = vshrl.u32 %v221, 7
    %v223 = vsub.s32 0, %v222
    %v224 = vrot.slane %v61, %v223
    %v226 = vmul.f32 %v219, %v224
    %v228 = vlaneseq
    %v229 = vshrl.u32 %v228, 7
    %v230 = vsub.s32 0, %v229
    %v231 = vrot.slane %v62, %v230
    %v233 = vadd.f32 %v226, %v231
    %234 = vst [vmem:[#allocation7] sm:$0xf] %v233
    // Predicated region
    $region26: #{tpu_custom_call.1} parent=1 // pred_check
      _
    $region27: #{tpu_custom_call.1} parent=1 // pred_check_branch
      %236 = sbr.rel (0) target = $region29
    $region28: #{tpu_custom_call.1} parent=1 // pred_region
      %s238 = ssub.s32 64, 64
      %239 = vsyncadd [#allocation4], %s238
      %s241 = sshll.u32 [#allocation7], 4
      %s242 = int_to_ptr.vmem [resolvable:$true] %s241
      %244 = dma.vmem_to_hbm [thread:$0]  %s242, 64, %s4, [#allocation4]
    $region29: #{tpu_custom_call.1} parent=1 // pred_fallthru
      _
    // Predicated region
    $region30: #{tpu_custom_call.1} parent=1 // pred_check
      _
    $region31: #{tpu_custom_call.1} parent=1 // pred_check_branch
      %246 = sbr.rel (0) target = $region33
    $region32: #{tpu_custom_call.1} parent=1 // pred_region
      %247 = dma.done [#allocation4], 64
    $region33: #{tpu_custom_call.1} parent=1 // pred_fallthru
      _
    %248 = vsyncpa [#allocation3], 1
    %249 = vsyncpa [#allocation6], 1
    %250 = vsyncpa [#allocation4], 1

</llo_original>
